<compile_context>
chip_gen: v5e
topology: v5e:2x2
jax: 0.10.0
libtpu: 0.0.40
codegen_flags: <defaults>
</compile_context>

<pallas_src>
import math
import jax
import jax.numpy as jnp
from jax import lax
from jax.experimental import pallas as pl
from jax.experimental.pallas import tpu as pltpu


def _round_up(n, m):
    return ((n + m - 1) // m) * m


def _rnn_kernel(xu_ref, w_ref, hseq_ref, h_scratch):
    # xu_ref:    (TB, BB, Hp)  time-major block of  x @ U_f + b_f  (padded)
    # w_ref:     (Hp, Hp)      recurrent weight (padded, grid-invariant/resident)
    # hseq_ref:  (TB, BB, Hp)  hidden states emitted for this block
    # h_scratch: (BB, Hp)      hidden state carried across the time grid axis
    t_blk = pl.program_id(1)          # time-block index (grid axis 1, fastest)

    @pl.when(t_blk == 0)
    def _():
        h_scratch[...] = jnp.zeros_like(h_scratch)

    w = w_ref[...]
    tb = xu_ref.shape[0]              # static timesteps per grid step

    def step(i, h_prev):
        z = xu_ref[i] + jnp.dot(h_prev, w, preferred_element_type=jnp.float32)
        h_new = jax.nn.sigmoid(z)
        hseq_ref[i] = h_new           # full (BB, Hp) lane-dense, unmasked store
        return h_new

    # Full unroll: gives the LLO scheduler visibility across the TB matmuls.
    h_scratch[...] = lax.fori_loop(0, tb, step, h_scratch[...], unroll=True)


def custom_rnn_forward(x, U_f, W_f, b_f):
    """x: (bs, seq, input_sz) -> (h_T: (bs, hidden), hidden_seq: (bs, seq, hidden))."""
    bs, seq, _ = x.shape
    hidden = U_f.shape[1]

    # Padded sizes: lanes (128) on hidden, sublanes (8) on batch and time.
    hid_p = _round_up(hidden, 128)
    bs_p = _round_up(bs, 8)

    # Batch block: up to 128 MXU rows per recurrent matmul; pad batch to fit.
    bb = min(bs_p, 128)
    bs_p = _round_up(bs_p, bb)

    # Time block: 8..32 timesteps per grid step (always divides padded seq);
    # shrink if the per-block XU slab would blow up VMEM for large hidden.
    seq_p = _round_up(seq, 8)
    tb = math.gcd(seq_p, 32)          # power of two in {8, 16, 32}
    while tb > 8 and tb * bb * hid_p * 4 > (2 << 20):
        tb //= 2                      # still divides seq_p (power of two)

    # Hoisted input projection: one big MXU GEMM over the whole sequence,
    # produced directly in time-major layout with the bias folded in.
    xu = jnp.einsum(
        "bti,ih->tbh",
        x.astype(jnp.float32), U_f.astype(jnp.float32),
        precision=lax.Precision.HIGHEST,
    ) + b_f.astype(jnp.float32)                                   # (seq, bs, hidden)
    xu_p = jnp.pad(xu, ((0, seq_p - seq), (0, bs_p - bs), (0, hid_p - hidden)))
    w_p = jnp.pad(W_f.astype(jnp.float32),
                  ((0, hid_p - hidden), (0, hid_p - hidden)))

    grid = (bs_p // bb, seq_p // tb)

    hseq_tm = pl.pallas_call(
        _rnn_kernel,
        out_shape=jax.ShapeDtypeStruct((seq_p, bs_p, hid_p), jnp.float32),
        grid_spec=pltpu.PrefetchScalarGridSpec(
            num_scalar_prefetch=0,
            grid=grid,
            in_specs=[
                pl.BlockSpec((tb, bb, hid_p), lambda b, t: (t, b, 0)),   # XU slab
                pl.BlockSpec((hid_p, hid_p), lambda b, t: (0, 0)),       # W (resident)
            ],
            out_specs=pl.BlockSpec((tb, bb, hid_p), lambda b, t: (t, b, 0)),
            scratch_shapes=[pltpu.VMEM((bb, hid_p), jnp.float32)],       # carried h
        ),
        compiler_params=pltpu.CompilerParams(
            # batch axis is independent (megacore-parallel on v7x);
            # time axis carries the recurrence -> arbitrary (serial).
            dimension_semantics=("parallel", "arbitrary"),
            vmem_limit_bytes=48 * 1024 * 1024,
        ),
    )(xu_p, w_p)

    hidden_seq = jnp.transpose(hseq_tm[:seq, :bs, :hidden], (1, 0, 2)).astype(x.dtype)
    h_last = hidden_seq[:, -1, :]
    return h_last, hidden_seq


def _reference(x, U_f, W_f, b_f):
    bs, seq, _ = x.shape
    hidden = U_f.shape[1]
    h = jnp.zeros((bs, hidden), dtype=jnp.float32)
    outs = []
    for t in range(seq):
        h = jax.nn.sigmoid(x[:, t, :] @ U_f + h @ W_f + b_f)
        outs.append(h[:, None, :])
    return h, jnp.concatenate(outs, axis=1)


if __name__ == "__main__":
    bs, seq, input_sz, hidden_sz = 2, 8, 16, 32

    key = jax.random.PRNGKey(0)
    kx, ku, kw, kb = jax.random.split(key, 4)

    stdv = 1.0 / math.sqrt(hidden_sz)
    x = jax.random.normal(kx, (bs, seq, input_sz), dtype=jnp.float32)
    U_f = jax.random.uniform(ku, (input_sz, hidden_sz), jnp.float32, -stdv, stdv)
    W_f = jax.random.uniform(kw, (hidden_sz, hidden_sz), jnp.float32, -stdv, stdv)
    b_f = jax.random.uniform(kb, (hidden_sz,), jnp.float32, -stdv, stdv)

    h_last, hidden_seq = jax.block_until_ready(custom_rnn_forward(x, U_f, W_f, b_f))

    h_expected, hseq_expected = _reference(x, U_f, W_f, b_f)
    assert h_last.shape == (bs, hidden_sz)
    assert hidden_seq.shape == (bs, seq, hidden_sz)
    assert jnp.allclose(h_last, h_expected, atol=1e-5)
    assert jnp.allclose(hidden_seq, hseq_expected, atol=1e-5)

    print("KERNEL_OK")
</pallas_src>

<mosaic_0001>
module attributes {stable_mosaic.version = 11 : i64} {
  func.func @_rnn_kernel(%arg0: i32, %arg1: i32, %arg2: memref<8x8x128xf32, #tpu.memory_space<vmem>>, %arg3: memref<128x128xf32, #tpu.memory_space<vmem>>, %arg4: memref<8x8x128xf32, #tpu.memory_space<vmem>>, %arg5: memref<8x128xf32, #tpu.memory_space<vmem>>) attributes {dimension_semantics = [#tpu.dimension_semantics<parallel>, #tpu.dimension_semantics<arbitrary>], iteration_bounds = array<i64: 1, 1>, scalar_prefetch = 0 : i64, scratch_operands = 1 : i64, tpu.core_type = #tpu.core_type<tc>, window_params = [{transform_indices = @transform_0, window_bounds = array<i64: 8, 8, 128>}, {pipeline_mode = #tpu.pipeline_mode<synchronous>, transform_indices = @transform_1, window_bounds = array<i64: 128, 128>}, {transform_indices = @transform_2, window_bounds = array<i64: 8, 8, 128>}]} {
    %c0_i32 = arith.constant 0 : i32
    %0 = arith.cmpi eq, %arg1, %c0_i32 : i32
    %1 = arith.extui %0 : i1 to i32
    %c0_i32_0 = arith.constant 0 : i32
    %2 = arith.cmpi ne, %1, %c0_i32_0 : i32
    scf.if %2 {
      %cst_54 = arith.constant 0.000000e+00 : f32
      %118 = vector.broadcast %cst_54 : f32 to vector<8x128xf32>
      %c0_55 = arith.constant 0 : index
      %c0_56 = arith.constant 0 : index
      %119 = vector.load %arg5[%c0_55, %c0_56] : memref<8x128xf32, #tpu.memory_space<vmem>>, vector<8x128xf32>
      tpu.vector_store %arg5[%c0_55, %c0_56], %118 {strides = array<i32>} : memref<8x128xf32, #tpu.memory_space<vmem>>, vector<8x128xf32>,
    } else {
    }
    %c0 = arith.constant 0 : index
    %c0_1 = arith.constant 0 : index
    %3 = vector.load %arg3[%c0, %c0_1] : memref<128x128xf32, #tpu.memory_space<vmem>>, vector<128x128xf32>
    %c0_2 = arith.constant 0 : index
    %c0_3 = arith.constant 0 : index
    %4 = vector.load %arg5[%c0_2, %c0_3] : memref<8x128xf32, #tpu.memory_space<vmem>>, vector<8x128xf32>
    %c0_i32_4 = arith.constant 0 : i32
    %5 = arith.index_cast %c0_i32_4 : i32 to index
    %c0_5 = arith.constant 0 : index
    %c0_6 = arith.constant 0 : index
    %6 = vector.load %arg2[%5, %c0_5, %c0_6] : memref<8x8x128xf32, #tpu.memory_space<vmem>>, vector<1x8x128xf32>
    %7 = vector.shape_cast %6 : vector<1x8x128xf32> to vector<8x128xf32>
    %cst = arith.constant dense<0.000000e+00> : vector<8x128xf32>
    %8 = tpu.matmul %4, %3, %cst {dimension_numbers = #tpu.dot_dimension_numbers<[1], [0], [0], [1], [0, 0, 1, 1], [], []>} : vector<8x128xf32>, vector<128x128xf32>, vector<8x128xf32> -> vector<8x128xf32>
    %9 = arith.addf %7, %8 : vector<8x128xf32>
    %10 = arith.negf %9 : vector<8x128xf32>
    %11 = math.exp %10 : vector<8x128xf32>
    %cst_7 = arith.constant 1.000000e+00 : f32
    %12 = vector.broadcast %cst_7 : f32 to vector<8x128xf32>
    %13 = arith.addf %12, %11 : vector<8x128xf32>
    %14 = arith.divf %12, %13 : vector<8x128xf32>
    %15 = arith.index_cast %c0_i32_4 : i32 to index
    %c0_8 = arith.constant 0 : index
    %c0_9 = arith.constant 0 : index
    %16 = vector.load %arg4[%15, %c0_8, %c0_9] : memref<8x8x128xf32, #tpu.memory_space<vmem>>, vector<1x8x128xf32>
    %17 = vector.shape_cast %16 : vector<1x8x128xf32> to vector<8x128xf32>
    %18 = vector.shape_cast %14 : vector<8x128xf32> to vector<1x8x128xf32>
    tpu.vector_store %arg4[%15, %c0_8, %c0_9], %18 {strides = array<i32>} : memref<8x8x128xf32, #tpu.memory_space<vmem>>, vector<1x8x128xf32>,
    %c1_i32 = arith.constant 1 : i32
    %19 = arith.index_cast %c1_i32 : i32 to index
    %c0_10 = arith.constant 0 : index
    %c0_11 = arith.constant 0 : index
    %20 = vector.load %arg2[%19, %c0_10, %c0_11] : memref<8x8x128xf32, #tpu.memory_space<vmem>>, vector<1x8x128xf32>
    %21 = vector.shape_cast %20 : vector<1x8x128xf32> to vector<8x128xf32>
    %cst_12 = arith.constant dense<0.000000e+00> : vector<8x128xf32>
    %22 = tpu.matmul %14, %3, %cst_12 {dimension_numbers = #tpu.dot_dimension_numbers<[1], [0], [0], [1], [0, 0, 1, 1], [], []>} : vector<8x128xf32>, vector<128x128xf32>, vector<8x128xf32> -> vector<8x128xf32>
    %23 = arith.addf %21, %22 : vector<8x128xf32>
    %24 = arith.negf %23 : vector<8x128xf32>
    %25 = math.exp %24 : vector<8x128xf32>
    %cst_13 = arith.constant 1.000000e+00 : f32
    %26 = vector.broadcast %cst_13 : f32 to vector<8x128xf32>
    %27 = arith.addf %26, %25 : vector<8x128xf32>
    %28 = arith.divf %26, %27 : vector<8x128xf32>
    %29 = arith.index_cast %c1_i32 : i32 to index
    %c0_14 = arith.constant 0 : index
    %c0_15 = arith.constant 0 : index
    %30 = vector.load %arg4[%29, %c0_14, %c0_15] : memref<8x8x128xf32, #tpu.memory_space<vmem>>, vector<1x8x128xf32>
    %31 = vector.shape_cast %30 : vector<1x8x128xf32> to vector<8x128xf32>
    %32 = vector.shape_cast %28 : vector<8x128xf32> to vector<1x8x128xf32>
    tpu.vector_store %arg4[%29, %c0_14, %c0_15], %32 {strides = array<i32>} : memref<8x8x128xf32, #tpu.memory_space<vmem>>, vector<1x8x128xf32>,
    %c2_i32 = arith.constant 2 : i32
    %33 = arith.index_cast %c2_i32 : i32 to index
    %c0_16 = arith.constant 0 : index
    %c0_17 = arith.constant 0 : index
    %34 = vector.load %arg2[%33, %c0_16, %c0_17] : memref<8x8x128xf32, #tpu.memory_space<vmem>>, vector<1x8x128xf32>
    %35 = vector.shape_cast %34 : vector<1x8x128xf32> to vector<8x128xf32>
    %cst_18 = arith.constant dense<0.000000e+00> : vector<8x128xf32>
    %36 = tpu.matmul %28, %3, %cst_18 {dimension_numbers = #tpu.dot_dimension_numbers<[1], [0], [0], [1], [0, 0, 1, 1], [], []>} : vector<8x128xf32>, vector<128x128xf32>, vector<8x128xf32> -> vector<8x128xf32>
    %37 = arith.addf %35, %36 : vector<8x128xf32>
    %38 = arith.negf %37 : vector<8x128xf32>
    %39 = math.exp %38 : vector<8x128xf32>
    %cst_19 = arith.constant 1.000000e+00 : f32
    %40 = vector.broadcast %cst_19 : f32 to vector<8x128xf32>
    %41 = arith.addf %40, %39 : vector<8x128xf32>
    %42 = arith.divf %40, %41 : vector<8x128xf32>
    %43 = arith.index_cast %c2_i32 : i32 to index
    %c0_20 = arith.constant 0 : index
    %c0_21 = arith.constant 0 : index
    %44 = vector.load %arg4[%43, %c0_20, %c0_21] : memref<8x8x128xf32, #tpu.memory_space<vmem>>, vector<1x8x128xf32>
    %45 = vector.shape_cast %44 : vector<1x8x128xf32> to vector<8x128xf32>
    %46 = vector.shape_cast %42 : vector<8x128xf32> to vector<1x8x128xf32>
    tpu.vector_store %arg4[%43, %c0_20, %c0_21], %46 {strides = array<i32>} : memref<8x8x128xf32, #tpu.memory_space<vmem>>, vector<1x8x128xf32>,
    %c3_i32 = arith.constant 3 : i32
    %47 = arith.index_cast %c3_i32 : i32 to index
    %c0_22 = arith.constant 0 : index
    %c0_23 = arith.constant 0 : index
    %48 = vector.load %arg2[%47, %c0_22, %c0_23] : memref<8x8x128xf32, #tpu.memory_space<vmem>>, vector<1x8x128xf32>
    %49 = vector.shape_cast %48 : vector<1x8x128xf32> to vector<8x128xf32>
    %cst_24 = arith.constant dense<0.000000e+00> : vector<8x128xf32>
    %50 = tpu.matmul %42, %3, %cst_24 {dimension_numbers = #tpu.dot_dimension_numbers<[1], [0], [0], [1], [0, 0, 1, 1], [], []>} : vector<8x128xf32>, vector<128x128xf32>, vector<8x128xf32> -> vector<8x128xf32>
    %51 = arith.addf %49, %50 : vector<8x128xf32>
    %52 = arith.negf %51 : vector<8x128xf32>
    %53 = math.exp %52 : vector<8x128xf32>
    %cst_25 = arith.constant 1.000000e+00 : f32
    %54 = vector.broadcast %cst_25 : f32 to vector<8x128xf32>
    %55 = arith.addf %54, %53 : vector<8x128xf32>
    %56 = arith.divf %54, %55 : vector<8x128xf32>
    %57 = arith.index_cast %c3_i32 : i32 to index
    %c0_26 = arith.constant 0 : index
    %c0_27 = arith.constant 0 : index
    %58 = vector.load %arg4[%57, %c0_26, %c0_27] : memref<8x8x128xf32, #tpu.memory_space<vmem>>, vector<1x8x128xf32>
    %59 = vector.shape_cast %58 : vector<1x8x128xf32> to vector<8x128xf32>
    %60 = vector.shape_cast %56 : vector<8x128xf32> to vector<1x8x128xf32>
    tpu.vector_store %arg4[%57, %c0_26, %c0_27], %60 {strides = array<i32>} : memref<8x8x128xf32, #tpu.memory_space<vmem>>, vector<1x8x128xf32>,
    %c4_i32 = arith.constant 4 : i32
    %61 = arith.index_cast %c4_i32 : i32 to index
    %c0_28 = arith.constant 0 : index
    %c0_29 = arith.constant 0 : index
    %62 = vector.load %arg2[%61, %c0_28, %c0_29] : memref<8x8x128xf32, #tpu.memory_space<vmem>>, vector<1x8x128xf32>
    %63 = vector.shape_cast %62 : vector<1x8x128xf32> to vector<8x128xf32>
    %cst_30 = arith.constant dense<0.000000e+00> : vector<8x128xf32>
    %64 = tpu.matmul %56, %3, %cst_30 {dimension_numbers = #tpu.dot_dimension_numbers<[1], [0], [0], [1], [0, 0, 1, 1], [], []>} : vector<8x128xf32>, vector<128x128xf32>, vector<8x128xf32> -> vector<8x128xf32>
    %65 = arith.addf %63, %64 : vector<8x128xf32>
    %66 = arith.negf %65 : vector<8x128xf32>
    %67 = math.exp %66 : vector<8x128xf32>
    %cst_31 = arith.constant 1.000000e+00 : f32
    %68 = vector.broadcast %cst_31 : f32 to vector<8x128xf32>
    %69 = arith.addf %68, %67 : vector<8x128xf32>
    %70 = arith.divf %68, %69 : vector<8x128xf32>
    %71 = arith.index_cast %c4_i32 : i32 to index
    %c0_32 = arith.constant 0 : index
    %c0_33 = arith.constant 0 : index
    %72 = vector.load %arg4[%71, %c0_32, %c0_33] : memref<8x8x128xf32, #tpu.memory_space<vmem>>, vector<1x8x128xf32>
    %73 = vector.shape_cast %72 : vector<1x8x128xf32> to vector<8x128xf32>
    %74 = vector.shape_cast %70 : vector<8x128xf32> to vector<1x8x128xf32>
    tpu.vector_store %arg4[%71, %c0_32, %c0_33], %74 {strides = array<i32>} : memref<8x8x128xf32, #tpu.memory_space<vmem>>, vector<1x8x128xf32>,
    %c5_i32 = arith.constant 5 : i32
    %75 = arith.index_cast %c5_i32 : i32 to index
    %c0_34 = arith.constant 0 : index
    %c0_35 = arith.constant 0 : index
    %76 = vector.load %arg2[%75, %c0_34, %c0_35] : memref<8x8x128xf32, #tpu.memory_space<vmem>>, vector<1x8x128xf32>
    %77 = vector.shape_cast %76 : vector<1x8x128xf32> to vector<8x128xf32>
    %cst_36 = arith.constant dense<0.000000e+00> : vector<8x128xf32>
    %78 = tpu.matmul %70, %3, %cst_36 {dimension_numbers = #tpu.dot_dimension_numbers<[1], [0], [0], [1], [0, 0, 1, 1], [], []>} : vector<8x128xf32>, vector<128x128xf32>, vector<8x128xf32> -> vector<8x128xf32>
    %79 = arith.addf %77, %78 : vector<8x128xf32>
    %80 = arith.negf %79 : vector<8x128xf32>
    %81 = math.exp %80 : vector<8x128xf32>
    %cst_37 = arith.constant 1.000000e+00 : f32
    %82 = vector.broadcast %cst_37 : f32 to vector<8x128xf32>
    %83 = arith.addf %82, %81 : vector<8x128xf32>
    %84 = arith.divf %82, %83 : vector<8x128xf32>
    %85 = arith.index_cast %c5_i32 : i32 to index
    %c0_38 = arith.constant 0 : index
    %c0_39 = arith.constant 0 : index
    %86 = vector.load %arg4[%85, %c0_38, %c0_39] : memref<8x8x128xf32, #tpu.memory_space<vmem>>, vector<1x8x128xf32>
    %87 = vector.shape_cast %86 : vector<1x8x128xf32> to vector<8x128xf32>
    %88 = vector.shape_cast %84 : vector<8x128xf32> to vector<1x8x128xf32>
    tpu.vector_store %arg4[%85, %c0_38, %c0_39], %88 {strides = array<i32>} : memref<8x8x128xf32, #tpu.memory_space<vmem>>, vector<1x8x128xf32>,
    %c6_i32 = arith.constant 6 : i32
    %89 = arith.index_cast %c6_i32 : i32 to index
    %c0_40 = arith.constant 0 : index
    %c0_41 = arith.constant 0 : index
    %90 = vector.load %arg2[%89, %c0_40, %c0_41] : memref<8x8x128xf32, #tpu.memory_space<vmem>>, vector<1x8x128xf32>
    %91 = vector.shape_cast %90 : vector<1x8x128xf32> to vector<8x128xf32>
    %cst_42 = arith.constant dense<0.000000e+00> : vector<8x128xf32>
    %92 = tpu.matmul %84, %3, %cst_42 {dimension_numbers = #tpu.dot_dimension_numbers<[1], [0], [0], [1], [0, 0, 1, 1], [], []>} : vector<8x128xf32>, vector<128x128xf32>, vector<8x128xf32> -> vector<8x128xf32>
    %93 = arith.addf %91, %92 : vector<8x128xf32>
    %94 = arith.negf %93 : vector<8x128xf32>
    %95 = math.exp %94 : vector<8x128xf32>
    %cst_43 = arith.constant 1.000000e+00 : f32
    %96 = vector.broadcast %cst_43 : f32 to vector<8x128xf32>
    %97 = arith.addf %96, %95 : vector<8x128xf32>
    %98 = arith.divf %96, %97 : vector<8x128xf32>
    %99 = arith.index_cast %c6_i32 : i32 to index
    %c0_44 = arith.constant 0 : index
    %c0_45 = arith.constant 0 : index
    %100 = vector.load %arg4[%99, %c0_44, %c0_45] : memref<8x8x128xf32, #tpu.memory_space<vmem>>, vector<1x8x128xf32>
    %101 = vector.shape_cast %100 : vector<1x8x128xf32> to vector<8x128xf32>
    %102 = vector.shape_cast %98 : vector<8x128xf32> to vector<1x8x128xf32>
    tpu.vector_store %arg4[%99, %c0_44, %c0_45], %102 {strides = array<i32>} : memref<8x8x128xf32, #tpu.memory_space<vmem>>, vector<1x8x128xf32>,
    %c7_i32 = arith.constant 7 : i32
    %103 = arith.index_cast %c7_i32 : i32 to index
    %c0_46 = arith.constant 0 : index
    %c0_47 = arith.constant 0 : index
    %104 = vector.load %arg2[%103, %c0_46, %c0_47] : memref<8x8x128xf32, #tpu.memory_space<vmem>>, vector<1x8x128xf32>
    %105 = vector.shape_cast %104 : vector<1x8x128xf32> to vector<8x128xf32>
    %cst_48 = arith.constant dense<0.000000e+00> : vector<8x128xf32>
    %106 = tpu.matmul %98, %3, %cst_48 {dimension_numbers = #tpu.dot_dimension_numbers<[1], [0], [0], [1], [0, 0, 1, 1], [], []>} : vector<8x128xf32>, vector<128x128xf32>, vector<8x128xf32> -> vector<8x128xf32>
    %107 = arith.addf %105, %106 : vector<8x128xf32>
    %108 = arith.negf %107 : vector<8x128xf32>
    %109 = math.exp %108 : vector<8x128xf32>
    %cst_49 = arith.constant 1.000000e+00 : f32
    %110 = vector.broadcast %cst_49 : f32 to vector<8x128xf32>
    %111 = arith.addf %110, %109 : vector<8x128xf32>
    %112 = arith.divf %110, %111 : vector<8x128xf32>
    %113 = arith.index_cast %c7_i32 : i32 to index
    %c0_50 = arith.constant 0 : index
    %c0_51 = arith.constant 0 : index
    %114 = vector.load %arg4[%113, %c0_50, %c0_51] : memref<8x8x128xf32, #tpu.memory_space<vmem>>, vector<1x8x128xf32>
    %115 = vector.shape_cast %114 : vector<1x8x128xf32> to vector<8x128xf32>
    %116 = vector.shape_cast %112 : vector<8x128xf32> to vector<1x8x128xf32>
    tpu.vector_store %arg4[%113, %c0_50, %c0_51], %116 {strides = array<i32>} : memref<8x8x128xf32, #tpu.memory_space<vmem>>, vector<1x8x128xf32>,
    %c8_i32 = arith.constant 8 : i32
    %c0_52 = arith.constant 0 : index
    %c0_53 = arith.constant 0 : index
    %117 = vector.load %arg5[%c0_52, %c0_53] : memref<8x128xf32, #tpu.memory_space<vmem>>, vector<8x128xf32>
    tpu.vector_store %arg5[%c0_52, %c0_53], %112 {strides = array<i32>} : memref<8x128xf32, #tpu.memory_space<vmem>>, vector<8x128xf32>,
    return
  }
  func.func @transform_0(%arg0: i32, %arg1: i32) -> (i32, i32, i32) {
    %c0_i32 = arith.constant 0 : i32
    %c0_i32_0 = arith.constant 0 : i32
    return %arg1, %arg0, %c0_i32 : i32, i32, i32
  }
  func.func @transform_1(%arg0: i32, %arg1: i32) -> (i32, i32) {
    %c0_i32 = arith.constant 0 : i32
    %c0_i32_0 = arith.constant 0 : i32
    %c0_i32_1 = arith.constant 0 : i32
    return %c0_i32, %c0_i32_0 : i32, i32
  }
  func.func @transform_2(%arg0: i32, %arg1: i32) -> (i32, i32, i32) {
    %c0_i32 = arith.constant 0 : i32
    %c0_i32_0 = arith.constant 0 : i32
    return %arg1, %arg0, %c0_i32 : i32, i32, i32
  }
}

</mosaic_0001>

<llo_original>
// kernel: tpu_custom_call.1
$region0: #{tpu_custom_call.1}
  #allocation0 [shape = 'u32[]', space=smem, size = 0x4, offset = 0x4, fixed_abs, tag = 'smem constant byte address 0x4 - core index']
  #allocation1 [shape = 'u32[72,128]{1,0:T(1,128)}', space=vmem, size = 0x9000, scoped, tag = 'internal scratch']
  #allocation2 [shape = 'f32[8,128]{1,0:T(8,128)}', space=vmem, size = 0x1000, scoped, tag = 'scratch operand']
  %s0 = inlined_call_operand.hbm [shape: f32[8,8,128], index: 0, kind: input, shape index: {}]
  %s1 = inlined_call_operand.hbm [shape: f32[128,128], index: 1, kind: input, shape index: {}]
  %s2 = inlined_call_operand.hbm [shape: f32[8,8,128], index: 2, kind: output, shape index: {}]
  %s3 = sld [smem:[#allocation0]]
  $region30: #{tpu_custom_call.1} parent=0
    _
  %s5 = ssub.s32 1, %s3
  %s6 = scalar_select 0, %s5, %s3
  $region1: #{tpu_custom_call.1} parent=0
    #allocation3 [shape = 'u8[32768]{0}', space=vmem, size = 0x8000, scoped, tag = 'input window, operand 0, single buffered']
    #allocation4 [shape = 's32[1]{0}', space=sflag, size = 0x4, scoped, tag = 'scoped memory for tpu_custom_call.1']
    #allocation5 [shape = 's32[1]{0}', space=sflag, size = 0x4, scoped, tag = 'scoped memory for tpu_custom_call.1']
    #allocation6 [shape = 'u8[65536]{0}', space=vmem, size = 0x10000, scoped, tag = 'input window, operand 1, single buffered']
    #allocation7 [shape = 's32[1]{0}', space=sflag, size = 0x4, scoped, tag = 'scoped memory for tpu_custom_call.1']
    #allocation8 [shape = 'u8[32768]{0}', space=vmem, size = 0x8000, scoped, tag = 'output window, operand 0, single buffered']
    %7 = vsyncpa [#allocation4], 0
    %8 = vsyncpa [#allocation7], 0
    %9 = vsyncpa [#allocation5], 0
    // Predicated region
    $region2: #{tpu_custom_call.1} parent=1 // pred_check
      _
    $region3: #{tpu_custom_call.1} parent=1 // pred_check_branch
      %11 = sbr.rel (0) target = $region5
    $region4: #{tpu_custom_call.1} parent=1 // pred_region
      %13 = vsyncadd [#allocation4], 0
      %s14 = sshll.u32 %s0, 4
      %s15 = int_to_ptr.hbm [resolvable:$true] %s14
      %s16 = sshll.u32 [#allocation3], 4
      %s17 = int_to_ptr.vmem [resolvable:$true] %s16
      %22 = dma.hbm_to_vmem [thread:$0]  %s15, 1024, %s17, [#allocation4], 128, 128, 8
    $region5: #{tpu_custom_call.1} parent=1 // pred_fallthru
      _
    // Predicated region
    $region6: #{tpu_custom_call.1} parent=1 // pred_check
      _
    $region7: #{tpu_custom_call.1} parent=1 // pred_check_branch
      %24 = sbr.rel (0) target = $region9
    $region8: #{tpu_custom_call.1} parent=1 // pred_region
      %26 = vsyncadd [#allocation7], 0
      %s27 = sshll.u32 %s1, 4
      %s28 = int_to_ptr.hbm [resolvable:$true] %s27
      %s29 = sshll.u32 [#allocation6], 4
      %s30 = int_to_ptr.vmem [resolvable:$true] %s29
      %35 = dma.hbm_to_vmem [thread:$0]  %s28, 2048, %s30, [#allocation7], 128, 128, 8
    $region9: #{tpu_custom_call.1} parent=1 // pred_fallthru
      _
    // Predicated region
    $region10: #{tpu_custom_call.1} parent=1 // pred_check
      _
    $region11: #{tpu_custom_call.1} parent=1 // pred_check_branch
      %37 = sbr.rel (0) target = $region13
    $region12: #{tpu_custom_call.1} parent=1 // pred_region
      %39 = dma.done [#allocation4], 1024
    $region13: #{tpu_custom_call.1} parent=1 // pred_fallthru
      _
    // Predicated region
    $region14: #{tpu_custom_call.1} parent=1 // pred_check
      _
    $region15: #{tpu_custom_call.1} parent=1 // pred_check_branch
      %41 = sbr.rel (0) target = $region17
    $region16: #{tpu_custom_call.1} parent=1 // pred_region
      %43 = dma.done [#allocation7], 2048
    $region17: #{tpu_custom_call.1} parent=1 // pred_fallthru
      _
    %p44 = scmp.eq.s32.totalorder 0, 0
    // Predicated region
    $region18: #{tpu_custom_call.1} parent=1 // pred_check
      %p45 = pneg %p44
    $region19: #{tpu_custom_call.1} parent=1 // pred_check_branch
      %47 = sbr.rel (%p45) target = $region21
    $region20: #{tpu_custom_call.1} parent=1 // pred_region
      %48 = vst [vmem:[#allocation2] sm:$0xff] 0.0
    $region21: #{tpu_custom_call.1} parent=1 // pred_fallthru
      _
    %v49 = vld [vmem:[#allocation6] sm:$0xff]
    %v50 = vld [vmem:[#allocation6 + $0x8] sm:$0xff]
    %v51 = vld [vmem:[#allocation6 + $0x10] sm:$0xff]
    %v52 = vld [vmem:[#allocation6 + $0x18] sm:$0xff]
    %v53 = vld [vmem:[#allocation6 + $0x20] sm:$0xff]
    %v54 = vld [vmem:[#allocation6 + $0x28] sm:$0xff]
    %v55 = vld [vmem:[#allocation6 + $0x30] sm:$0xff]
    %v56 = vld [vmem:[#allocation6 + $0x38] sm:$0xff]
    %v57 = vld [vmem:[#allocation6 + $0x40] sm:$0xff]
    %v58 = vld [vmem:[#allocation6 + $0x48] sm:$0xff]
    %v59 = vld [vmem:[#allocation6 + $0x50] sm:$0xff]
    %v60 = vld [vmem:[#allocation6 + $0x58] sm:$0xff]
    %v61 = vld [vmem:[#allocation6 + $0x60] sm:$0xff]
    %v62 = vld [vmem:[#allocation6 + $0x68] sm:$0xff]
    %v63 = vld [vmem:[#allocation6 + $0x70] sm:$0xff]
    %v64 = vld [vmem:[#allocation6 + $0x78] sm:$0xff]
    %v65 = vld [vmem:[#allocation2] sm:$0xff]
    %v66 = vld [vmem:[#allocation3] sm:$0xff]
    %67 = vmatpush.msra.mxu0 %v64
    %68 = vmatpush.msra.mxu0 %v63
    %69 = vmatpush.msra.mxu0 %v62
    %70 = vmatpush.msra.mxu0 %v61
    %71 = vmatpush.msra.mxu0 %v60
    %72 = vmatpush.msra.mxu0 %v59
    %73 = vmatpush.msra.mxu0 %v58
    %74 = vmatpush.msra.mxu0 %v57
    %75 = vmatpush.msra.mxu0 %v56
    %76 = vmatpush.msra.mxu0 %v55
    %77 = vmatpush.msra.mxu0 %v54
    %78 = vmatpush.msra.mxu0 %v53
    %79 = vmatpush.msra.mxu0 %v52
    %80 = vmatpush.msra.mxu0 %v51
    %81 = vmatpush.msra.mxu0 %v50
    %82 = vmatpush.msra.mxu0 %v49
    %83 = vmatmul.f32.gmra.mxu0 %v65
    %v84 = vpop.f32.mrf.mxu0
    %v85 = vadd.f32 0.0, %v84
    %86 = vdwg.mxu0
    %v87 = vadd.f32 %v66, %v85
    %v88 = vxor.u32 %v87, 2147483648
    %v89 = vmul.f32 %v88, 1.442695
    %v90 = vpow.pop %v89
    %v91 = vadd.f32 %v90, 1.0
    %v92 = vrcp.pop %v91
    %v93 = vmul.f32 %v91, %v92
    %v94 = vsub.f32 1.0, %v93
    %v95 = vmul.f32 %v92, %v94
    %v96 = vadd.f32 %v92, %v95
    %vm97 = vweird.f32 %v91
    %vm98 = vweird.f32 %v92
    %vm99 = vmor %vm97, %vm98
    %v100 = vsel %vm99, %v92, %v96
    %v101 = vand.u32 2147483647, %v91
    %vm102 = vcmp.eq.f32.partialorder %v101, 8.507059e+37
    %v103 = vand.u32 %v91, 2147483648
    %v104 = vor.u32 1.1754944e-38, %v103
    %v105 = vsel %vm102, %v104, %v100
    %v106 = vmul.f32 1.0, %v105
    %107 = vst [vmem:[#allocation8] sm:$0xff] %v106
    %s108 = scalar_lea.vmem [#allocation3], 8
    %v109 = vld [vmem:[%s108] sm:$0xff]
    %110 = vmatpush.msra.mxu0 %v64
    %111 = vmatpush.msra.mxu0 %v63
    %112 = vmatpush.msra.mxu0 %v62
    %113 = vmatpush.msra.mxu0 %v61
    %114 = vmatpush.msra.mxu0 %v60
    %115 = vmatpush.msra.mxu0 %v59
    %116 = vmatpush.msra.mxu0 %v58
    %117 = vmatpush.msra.mxu0 %v57
    %118 = vmatpush.msra.mxu0 %v56
    %119 = vmatpush.msra.mxu0 %v55
    %120 = vmatpush.msra.mxu0 %v54
    %121 = vmatpush.msra.mxu0 %v53
    %122 = vmatpush.msra.mxu0 %v52
    %123 = vmatpush.msra.mxu0 %v51
    %124 = vmatpush.msra.mxu0 %v50
    %125 = vmatpush.msra.mxu0 %v49
    %126 = vmatmul.f32.gmra.mxu0 %v106
    %v127 = vpop.f32.mrf.mxu0
    %v128 = vadd.f32 0.0, %v127
    %129 = vdwg.mxu0
    %v130 = vadd.f32 %v109, %v128
    %v131 = vxor.u32 %v130, 2147483648
    %v132 = vmul.f32 %v131, 1.442695
    %v133 = vpow.pop %v132
    %v134 = vadd.f32 %v133, 1.0
    %v135 = vrcp.pop %v134
    %v136 = vmul.f32 %v134, %v135
    %v137 = vsub.f32 1.0, %v136
    %v138 = vmul.f32 %v135, %v137
    %v139 = vadd.f32 %v135, %v138
    %vm140 = vweird.f32 %v134
    %vm141 = vweird.f32 %v135
    %vm142 = vmor %vm140, %vm141
    %v143 = vsel %vm142, %v135, %v139
    %v144 = vand.u32 2147483647, %v134
    %vm145 = vcmp.eq.f32.partialorder %v144, 8.507059e+37
    %v146 = vand.u32 %v134, 2147483648
    %v147 = vor.u32 1.1754944e-38, %v146
    %v148 = vsel %vm145, %v147, %v143
    %v149 = vmul.f32 1.0, %v148
    %s150 = scalar_lea.vmem [#allocation8], 8
    %151 = vst [vmem:[%s150] sm:$0xff] %v149
    %s152 = scalar_lea.vmem [#allocation3], 16
    %v153 = vld [vmem:[%s152] sm:$0xff]
    %154 = vmatpush.msra.mxu0 %v64
    %155 = vmatpush.msra.mxu0 %v63
    %156 = vmatpush.msra.mxu0 %v62
    %157 = vmatpush.msra.mxu0 %v61
    %158 = vmatpush.msra.mxu0 %v60
    %159 = vmatpush.msra.mxu0 %v59
    %160 = vmatpush.msra.mxu0 %v58
    %161 = vmatpush.msra.mxu0 %v57
    %162 = vmatpush.msra.mxu0 %v56
    %163 = vmatpush.msra.mxu0 %v55
    %164 = vmatpush.msra.mxu0 %v54
    %165 = vmatpush.msra.mxu0 %v53
    %166 = vmatpush.msra.mxu0 %v52
    %167 = vmatpush.msra.mxu0 %v51
    %168 = vmatpush.msra.mxu0 %v50
    %169 = vmatpush.msra.mxu0 %v49
    %170 = vmatmul.f32.gmra.mxu0 %v149
    %v171 = vpop.f32.mrf.mxu0
    %v172 = vadd.f32 0.0, %v171
    %173 = vdwg.mxu0
    %v174 = vadd.f32 %v153, %v172
    %v175 = vxor.u32 %v174, 2147483648
    %v176 = vmul.f32 %v175, 1.442695
    %v177 = vpow.pop %v176
    %v178 = vadd.f32 %v177, 1.0
    %v179 = vrcp.pop %v178
    %v180 = vmul.f32 %v178, %v179
    %v181 = vsub.f32 1.0, %v180
    %v182 = vmul.f32 %v179, %v181
    %v183 = vadd.f32 %v179, %v182
    %vm184 = vweird.f32 %v178
    %vm185 = vweird.f32 %v179
    %vm186 = vmor %vm184, %vm185
    %v187 = vsel %vm186, %v179, %v183
    %v188 = vand.u32 2147483647, %v178
    %vm189 = vcmp.eq.f32.partialorder %v188, 8.507059e+37
    %v190 = vand.u32 %v178, 2147483648
    %v191 = vor.u32 1.1754944e-38, %v190
    %v192 = vsel %vm189, %v191, %v187
    %v193 = vmul.f32 1.0, %v192
    %s194 = scalar_lea.vmem [#allocation8], 16
    %195 = vst [vmem:[%s194] sm:$0xff] %v193
    %s196 = scalar_lea.vmem [#allocation3], 24
    %v197 = vld [vmem:[%s196] sm:$0xff]
    %198 = vmatpush.msra.mxu0 %v64
    %199 = vmatpush.msra.mxu0 %v63
    %200 = vmatpush.msra.mxu0 %v62
    %201 = vmatpush.msra.mxu0 %v61
    %202 = vmatpush.msra.mxu0 %v60
    %203 = vmatpush.msra.mxu0 %v59
    %204 = vmatpush.msra.mxu0 %v58
    %205 = vmatpush.msra.mxu0 %v57
    %206 = vmatpush.msra.mxu0 %v56
    %207 = vmatpush.msra.mxu0 %v55
    %208 = vmatpush.msra.mxu0 %v54
    %209 = vmatpush.msra.mxu0 %v53
    %210 = vmatpush.msra.mxu0 %v52
    %211 = vmatpush.msra.mxu0 %v51
    %212 = vmatpush.msra.mxu0 %v50
    %213 = vmatpush.msra.mxu0 %v49
    %214 = vmatmul.f32.gmra.mxu0 %v193
    %v215 = vpop.f32.mrf.mxu0
    %v216 = vadd.f32 0.0, %v215
    %217 = vdwg.mxu0
    %v218 = vadd.f32 %v197, %v216
    %v219 = vxor.u32 %v218, 2147483648
    %v220 = vmul.f32 %v219, 1.442695
    %v221 = vpow.pop %v220
    %v222 = vadd.f32 %v221, 1.0
    %v223 = vrcp.pop %v222
    %v224 = vmul.f32 %v222, %v223
    %v225 = vsub.f32 1.0, %v224
    %v226 = vmul.f32 %v223, %v225
    %v227 = vadd.f32 %v223, %v226
    %vm228 = vweird.f32 %v222
    %vm229 = vweird.f32 %v223
    %vm230 = vmor %vm228, %vm229
    %v231 = vsel %vm230, %v223, %v227
    %v232 = vand.u32 2147483647, %v222
    %vm233 = vcmp.eq.f32.partialorder %v232, 8.507059e+37
    %v234 = vand.u32 %v222, 2147483648
    %v235 = vor.u32 1.1754944e-38, %v234
    %v236 = vsel %vm233, %v235, %v231
    %v237 = vmul.f32 1.0, %v236
    %s238 = scalar_lea.vmem [#allocation8], 24
    %239 = vst [vmem:[%s238] sm:$0xff] %v237
    %s240 = scalar_lea.vmem [#allocation3], 32
    %v241 = vld [vmem:[%s240] sm:$0xff]
    %242 = vmatpush.msra.mxu0 %v64
    %243 = vmatpush.msra.mxu0 %v63
    %244 = vmatpush.msra.mxu0 %v62
    %245 = vmatpush.msra.mxu0 %v61
    %246 = vmatpush.msra.mxu0 %v60
    %247 = vmatpush.msra.mxu0 %v59
    %248 = vmatpush.msra.mxu0 %v58
    %249 = vmatpush.msra.mxu0 %v57
    %250 = vmatpush.msra.mxu0 %v56
    %251 = vmatpush.msra.mxu0 %v55
    %252 = vmatpush.msra.mxu0 %v54
    %253 = vmatpush.msra.mxu0 %v53
    %254 = vmatpush.msra.mxu0 %v52
    %255 = vmatpush.msra.mxu0 %v51
    %256 = vmatpush.msra.mxu0 %v50
    %257 = vmatpush.msra.mxu0 %v49
    %258 = vmatmul.f32.gmra.mxu0 %v237
    %v259 = vpop.f32.mrf.mxu0
    %v260 = vadd.f32 0.0, %v259
    %261 = vdwg.mxu0
    %v262 = vadd.f32 %v241, %v260
    %v263 = vxor.u32 %v262, 2147483648
    %v264 = vmul.f32 %v263, 1.442695
    %v265 = vpow.pop %v264
    %v266 = vadd.f32 %v265, 1.0
    %v267 = vrcp.pop %v266
    %v268 = vmul.f32 %v266, %v267
    %v269 = vsub.f32 1.0, %v268
    %v270 = vmul.f32 %v267, %v269
    %v271 = vadd.f32 %v267, %v270
    %vm272 = vweird.f32 %v266
    %vm273 = vweird.f32 %v267
    %vm274 = vmor %vm272, %vm273
    %v275 = vsel %vm274, %v267, %v271
    %v276 = vand.u32 2147483647, %v266
    %vm277 = vcmp.eq.f32.partialorder %v276, 8.507059e+37
    %v278 = vand.u32 %v266, 2147483648
    %v279 = vor.u32 1.1754944e-38, %v278
    %v280 = vsel %vm277, %v279, %v275
    %v281 = vmul.f32 1.0, %v280
    %s282 = scalar_lea.vmem [#allocation8], 32
    %283 = vst [vmem:[%s282] sm:$0xff] %v281
    %s284 = scalar_lea.vmem [#allocation3], 40
    %v285 = vld [vmem:[%s284] sm:$0xff]
    %286 = vmatpush.msra.mxu0 %v64
    %287 = vmatpush.msra.mxu0 %v63
    %288 = vmatpush.msra.mxu0 %v62
    %289 = vmatpush.msra.mxu0 %v61
    %290 = vmatpush.msra.mxu0 %v60
    %291 = vmatpush.msra.mxu0 %v59
    %292 = vmatpush.msra.mxu0 %v58
    %293 = vmatpush.msra.mxu0 %v57
    %294 = vmatpush.msra.mxu0 %v56
    %295 = vmatpush.msra.mxu0 %v55
    %296 = vmatpush.msra.mxu0 %v54
    %297 = vmatpush.msra.mxu0 %v53
    %298 = vmatpush.msra.mxu0 %v52
    %299 = vmatpush.msra.mxu0 %v51
    %300 = vmatpush.msra.mxu0 %v50
    %301 = vmatpush.msra.mxu0 %v49
    %302 = vmatmul.f32.gmra.mxu0 %v281
    %v303 = vpop.f32.mrf.mxu0
    %v304 = vadd.f32 0.0, %v303
    %305 = vdwg.mxu0
    %v306 = vadd.f32 %v285, %v304
    %v307 = vxor.u32 %v306, 2147483648
    %v308 = vmul.f32 %v307, 1.442695
    %v309 = vpow.pop %v308
    %v310 = vadd.f32 %v309, 1.0
    %v311 = vrcp.pop %v310
    %v312 = vmul.f32 %v310, %v311
    %v313 = vsub.f32 1.0, %v312
    %v314 = vmul.f32 %v311, %v313
    %v315 = vadd.f32 %v311, %v314
    %vm316 = vweird.f32 %v310
    %vm317 = vweird.f32 %v311
    %vm318 = vmor %vm316, %vm317
    %v319 = vsel %vm318, %v311, %v315
    %v320 = vand.u32 2147483647, %v310
    %vm321 = vcmp.eq.f32.partialorder %v320, 8.507059e+37
    %v322 = vand.u32 %v310, 2147483648
    %v323 = vor.u32 1.1754944e-38, %v322
    %v324 = vsel %vm321, %v323, %v319
    %v325 = vmul.f32 1.0, %v324
    %s326 = scalar_lea.vmem [#allocation8], 40
    %327 = vst [vmem:[%s326] sm:$0xff] %v325
    %s328 = scalar_lea.vmem [#allocation3], 48
    %v329 = vld [vmem:[%s328] sm:$0xff]
    %330 = vmatpush.msra.mxu0 %v64
    %331 = vmatpush.msra.mxu0 %v63
    %332 = vmatpush.msra.mxu0 %v62
    %333 = vmatpush.msra.mxu0 %v61
    %334 = vmatpush.msra.mxu0 %v60
    %335 = vmatpush.msra.mxu0 %v59
    %336 = vmatpush.msra.mxu0 %v58
    %337 = vmatpush.msra.mxu0 %v57
    %338 = vmatpush.msra.mxu0 %v56
    %339 = vmatpush.msra.mxu0 %v55
    %340 = vmatpush.msra.mxu0 %v54
    %341 = vmatpush.msra.mxu0 %v53
    %342 = vmatpush.msra.mxu0 %v52
    %343 = vmatpush.msra.mxu0 %v51
    %344 = vmatpush.msra.mxu0 %v50
    %345 = vmatpush.msra.mxu0 %v49
    %346 = vmatmul.f32.gmra.mxu0 %v325
    %v347 = vpop.f32.mrf.mxu0
    %v348 = vadd.f32 0.0, %v347
    %349 = vdwg.mxu0
    %v350 = vadd.f32 %v329, %v348
    %v351 = vxor.u32 %v350, 2147483648
    %v352 = vmul.f32 %v351, 1.442695
    %v353 = vpow.pop %v352
    %v354 = vadd.f32 %v353, 1.0
    %v355 = vrcp.pop %v354
    %v356 = vmul.f32 %v354, %v355
    %v357 = vsub.f32 1.0, %v356
    %v358 = vmul.f32 %v355, %v357
    %v359 = vadd.f32 %v355, %v358
    %vm360 = vweird.f32 %v354
    %vm361 = vweird.f32 %v355
    %vm362 = vmor %vm360, %vm361
    %v363 = vsel %vm362, %v355, %v359
    %v364 = vand.u32 2147483647, %v354
    %vm365 = vcmp.eq.f32.partialorder %v364, 8.507059e+37
    %v366 = vand.u32 %v354, 2147483648
    %v367 = vor.u32 1.1754944e-38, %v366
    %v368 = vsel %vm365, %v367, %v363
    %v369 = vmul.f32 1.0, %v368
    %s370 = scalar_lea.vmem [#allocation8], 48
    %371 = vst [vmem:[%s370] sm:$0xff] %v369
    %s372 = scalar_lea.vmem [#allocation3], 56
    %v373 = vld [vmem:[%s372] sm:$0xff]
    %374 = vmatpush.msra.mxu0 %v64
    %375 = vmatpush.msra.mxu0 %v63
    %376 = vmatpush.msra.mxu0 %v62
    %377 = vmatpush.msra.mxu0 %v61
    %378 = vmatpush.msra.mxu0 %v60
    %379 = vmatpush.msra.mxu0 %v59
    %380 = vmatpush.msra.mxu0 %v58
    %381 = vmatpush.msra.mxu0 %v57
    %382 = vmatpush.msra.mxu0 %v56
    %383 = vmatpush.msra.mxu0 %v55
    %384 = vmatpush.msra.mxu0 %v54
    %385 = vmatpush.msra.mxu0 %v53
    %386 = vmatpush.msra.mxu0 %v52
    %387 = vmatpush.msra.mxu0 %v51
    %388 = vmatpush.msra.mxu0 %v50
    %389 = vmatpush.msra.mxu0 %v49
    %390 = vmatmul.f32.gmra.mxu0 %v369
    %v391 = vpop.f32.mrf.mxu0
    %v392 = vadd.f32 0.0, %v391
    %393 = vdwg.mxu0
    %v394 = vadd.f32 %v373, %v392
    %v395 = vxor.u32 %v394, 2147483648
    %v396 = vmul.f32 %v395, 1.442695
    %v397 = vpow.pop %v396
    %v398 = vadd.f32 %v397, 1.0
    %v399 = vrcp.pop %v398
    %v400 = vmul.f32 %v398, %v399
    %v401 = vsub.f32 1.0, %v400
    %v402 = vmul.f32 %v399, %v401
    %v403 = vadd.f32 %v399, %v402
    %vm404 = vweird.f32 %v398
    %vm405 = vweird.f32 %v399
    %vm406 = vmor %vm404, %vm405
    %v407 = vsel %vm406, %v399, %v403
    %v408 = vand.u32 2147483647, %v398
    %vm409 = vcmp.eq.f32.partialorder %v408, 8.507059e+37
    %v410 = vand.u32 %v398, 2147483648
    %v411 = vor.u32 1.1754944e-38, %v410
    %v412 = vsel %vm409, %v411, %v407
    %v413 = vmul.f32 1.0, %v412
    %s414 = scalar_lea.vmem [#allocation8], 56
    %415 = vst [vmem:[%s414] sm:$0xff] %v413
    %416 = vst [vmem:[#allocation2] sm:$0xff] %v413
    // Predicated region
    $region22: #{tpu_custom_call.1} parent=1 // pred_check
      _
    $region23: #{tpu_custom_call.1} parent=1 // pred_check_branch
      %418 = sbr.rel (0) target = $region25
    $region24: #{tpu_custom_call.1} parent=1 // pred_region
      %420 = vsyncadd [#allocation5], 0
      %s421 = sshll.u32 [#allocation8], 4
      %s422 = int_to_ptr.vmem [resolvable:$true] %s421
      %s423 = sshll.u32 %s2, 4
      %s424 = int_to_ptr.hbm [resolvable:$true] %s423
      %429 = dma.vmem_to_hbm [thread:$0]  %s422, 1024, %s424, [#allocation5], 128, 128, 8
    $region25: #{tpu_custom_call.1} parent=1 // pred_fallthru
      _
    // Predicated region
    $region26: #{tpu_custom_call.1} parent=1 // pred_check
      _
    $region27: #{tpu_custom_call.1} parent=1 // pred_check_branch
      %431 = sbr.rel (0) target = $region29
    $region28: #{tpu_custom_call.1} parent=1 // pred_region
      %433 = dma.done [#allocation5], 1024
    $region29: #{tpu_custom_call.1} parent=1 // pred_fallthru
      _
    %434 = vsyncpa [#allocation4], 1
    %435 = vsyncpa [#allocation7], 1
    %436 = vsyncpa [#allocation5], 1

</llo_original>
